<compile_context>
chip_gen: v7x
topology: tpu7x:2x2x1
jax: 0.10.0
libtpu: 0.0.40
codegen_flags: <defaults>
</compile_context>

<pallas_src>
import functools

import jax
import jax.numpy as jnp
from jax.experimental import pallas as pl
from jax.experimental.pallas import tpu as pltpu


# --------------------------------------------------------------------------
# Kernel
# --------------------------------------------------------------------------
def task_embedding_kernel(x_ref, w1_ref, b1_ref, w2_ref, b2_ref,
                          wh_ref, bh_ref, out_ref, *, act_dtype):
    cdt = w1_ref.dtype  # bf16 compute dtype for MXU operands

    # Cast x -> bf16 on the VPU (free; avoids a wrapper-side HBM pass).
    xc = x_ref[...].astype(cdt)

    # hidden layer 1: tanh(x @ W1 + b1)   (f32 accumulate, f32 bias-add)
    h = jnp.tanh(
        (jnp.dot(xc, w1_ref[...], preferred_element_type=jnp.float32)
         + b1_ref[...]).astype(act_dtype)
    )
    # hidden layer 2: tanh(h @ W2 + b2)
    h = jnp.tanh(
        (jnp.dot(h.astype(cdt), w2_ref[...], preferred_element_type=jnp.float32)
         + b2_ref[...]).astype(act_dtype)
    )
    # fused heads: [mean | log_var] = h @ [Wm | Wv] + [bm | bv]
    out_ref[...] = (
        jnp.dot(h.astype(cdt), wh_ref[...], preferred_element_type=jnp.float32)
        + bh_ref[...]
    ).astype(out_ref.dtype)


# --------------------------------------------------------------------------
# One-time parameter preprocessing (hoisted out of the forward pass)
# --------------------------------------------------------------------------
def prepare_params(params, compute_dtype=jnp.bfloat16):
    """Concat the two heads and cast weight matrices to the MXU dtype, once."""
    (w1, b1, w2, b2, wm, bm, wv, bv) = params
    wh = jnp.concatenate([wm, wv], axis=1)          # (hidden, 2*out_dim)
    bh = jnp.concatenate([bm, bv], axis=1)          # (1, 2*out_dim)
    return dict(
        w1=w1.astype(compute_dtype), b1=b1,
        w2=w2.astype(compute_dtype), b2=b2,
        wh=wh.astype(compute_dtype), bh=bh,
        out_dim=wm.shape[1],
    )


def _round_up(v, m):
    return ((v + m - 1) // m) * m


def _default_act_dtype():
    """bf16 activations where the VPU/EUP support it (v6e+), else f32."""
    try:
        kind = jax.devices()[0].device_kind.lower()
    except Exception:
        return jnp.float32
    if any(tag in kind for tag in ("v2", "v3", "v4", "v5")):
        return jnp.float32       # no bf16 VALU/EUP on v5e and earlier
    return jnp.bfloat16          # v6e / v7x and later


# --------------------------------------------------------------------------
# Forward pass
# --------------------------------------------------------------------------
def task_embedding_forward(x, prepared, *, block_b=4096, act_dtype=None):
    """Fused forward. x: (B, x_dim) float32. Returns (mean, log_var, 0)."""
    w1, b1 = prepared["w1"], prepared["b1"]
    w2, b2 = prepared["w2"], prepared["b2"]
    wh, bh = prepared["wh"], prepared["bh"]
    out_dim = prepared["out_dim"]

    B, x_dim = x.shape
    hidden_dim = w1.shape[1]
    if act_dtype is None:
        act_dtype = _default_act_dtype()

    # --- batch tiling ---------------------------------------------------
    # Tile is a multiple of 8 sublanes, large enough to amortize per-step
    # pipeline overhead, and capped at ~half the batch so the "parallel"
    # grid axis has >= 2 blocks to shard across v7x's two TensorCores.
    half_b = _round_up(-(-B // 2), 8)                # ceil(B/2) -> multiple of 8
    tb = max(8, min(block_b, half_b))
    n_blocks = pl.cdiv(B, tb)
    b_pad = n_blocks * tb
    xp = x if b_pad == B else jnp.pad(x, ((0, b_pad - B), (0, 0)))

    def const(shape):
        return pl.BlockSpec(shape, lambda i: (0,) * len(shape))

    # --- cost hint for XLA's scheduler -----------------------------------
    flops = 2 * B * hidden_dim * (x_dim + hidden_dim + 2 * out_dim)
    weight_bytes = sum(a.size * a.dtype.itemsize
                       for a in (w1, b1, w2, b2, wh, bh))
    bytes_accessed = (x.size * x.dtype.itemsize
                      + B * 2 * out_dim * 4
                      + weight_bytes)
    cost = pl.CostEstimate(flops=flops,
                           transcendentals=2 * B * hidden_dim,
                           bytes_accessed=bytes_accessed)

    kernel = functools.partial(task_embedding_kernel, act_dtype=act_dtype)

    fused = pl.pallas_call(
        kernel,
        out_shape=jax.ShapeDtypeStruct((b_pad, 2 * out_dim), jnp.float32),
        grid=(n_blocks,),
        in_specs=[
            pl.BlockSpec((tb, x_dim), lambda i: (i, 0)),   # x tiles: pipelined
            const((x_dim, hidden_dim)),                    # W1 (resident)
            const((1, hidden_dim)),                        # b1
            const((hidden_dim, hidden_dim)),               # W2
            const((1, hidden_dim)),                        # b2
            const((hidden_dim, 2 * out_dim)),              # [Wm | Wv]
            const((1, 2 * out_dim)),                       # [bm | bv]
        ],
        out_specs=pl.BlockSpec((tb, 2 * out_dim), lambda i: (i, 0)),
        compiler_params=pltpu.CompilerParams(
            dimension_semantics=("parallel",),
            vmem_limit_bytes=32 * 1024 * 1024,
        ),
        cost_estimate=cost,
    )(xp, w1, b1, w2, b2, wh, bh)

    fused = fused[:B]
    mean = fused[:, :out_dim]
    log_var = fused[:, out_dim:]

    # Third return element matches the PyTorch module's constant 0.
    return mean, log_var, 0


# --------------------------------------------------------------------------
# Init / reference
# --------------------------------------------------------------------------
def init_params(key, x_dim, hidden_dim, output_dim):
    """PyTorch-style uniform init; weights stored (in, out)."""
    ks = jax.random.split(key, 8)

    def linear(kw, kb, fan_in, fan_out):
        bound = 1.0 / jnp.sqrt(fan_in)
        w = jax.random.uniform(kw, (fan_in, fan_out), jnp.float32, -bound, bound)
        b = jax.random.uniform(kb, (1, fan_out), jnp.float32, -bound, bound)
        return w, b

    w1, b1 = linear(ks[0], ks[1], x_dim, hidden_dim)
    w2, b2 = linear(ks[2], ks[3], hidden_dim, hidden_dim)
    wm, bm = linear(ks[4], ks[5], hidden_dim, output_dim)
    wv, bv = linear(ks[6], ks[7], hidden_dim, output_dim)
    return (w1, b1, w2, b2, wm, bm, wv, bv)


def reference_forward(x, params):
    (w1, b1, w2, b2, wm, bm, wv, bv) = params
    h = jnp.tanh(x @ w1 + b1)
    h = jnp.tanh(h @ w2 + b2)
    return h @ wm + bm, h @ wv + bv


if __name__ == "__main__":
    key = jax.random.PRNGKey(0)
    k_x, k_p = jax.random.split(key)

    B, x_dim, hidden_dim, output_dim = 8, 32, 32, 16
    x = jax.random.normal(k_x, (B, x_dim), jnp.float32)
    params = init_params(k_p, x_dim, hidden_dim, output_dim)

    prepared = prepare_params(params)          # one-time weight prep (hoisted)
    mean, log_var, zero = task_embedding_forward(x, prepared)
    jax.block_until_ready((mean, log_var))

    ref_mean, ref_logvar = reference_forward(x, params)
    # bf16 MXU operands (and bf16 tanh on v6e+) with f32 accumulation ->
    # relaxed tolerance vs the pure-f32 reference.
    assert jnp.allclose(mean, ref_mean, atol=3e-2, rtol=3e-2)
    assert jnp.allclose(log_var, ref_logvar, atol=3e-2, rtol=3e-2)
    assert zero == 0

    print("KERNEL_OK")
</pallas_src>

<mosaic_0001>
module attributes {stable_mosaic.version = 11 : i64} {
  func.func @task_embedding_kernel(%arg0: i32, %arg1: memref<8x32xf32, #tpu.memory_space<vmem>>, %arg2: memref<32x32xbf16, #tpu.memory_space<vmem>>, %arg3: memref<1x32xf32, #tpu.memory_space<vmem>>, %arg4: memref<32x32xbf16, #tpu.memory_space<vmem>>, %arg5: memref<1x32xf32, #tpu.memory_space<vmem>>, %arg6: memref<32x32xbf16, #tpu.memory_space<vmem>>, %arg7: memref<1x32xf32, #tpu.memory_space<vmem>>, %arg8: memref<8x32xf32, #tpu.memory_space<vmem>>) attributes {dimension_semantics = [#tpu.dimension_semantics<parallel>], iteration_bounds = array<i64: 1>, scalar_prefetch = 0 : i64, scratch_operands = 0 : i64, tpu.core_type = #tpu.core_type<tc>, window_params = [{transform_indices = @transform_0, window_bounds = array<i64: 8, 32>}, {pipeline_mode = #tpu.pipeline_mode<synchronous>, transform_indices = @transform_1, window_bounds = array<i64: 32, 32>}, {pipeline_mode = #tpu.pipeline_mode<synchronous>, transform_indices = @transform_2, window_bounds = array<i64: 1, 32>}, {pipeline_mode = #tpu.pipeline_mode<synchronous>, transform_indices = @transform_3, window_bounds = array<i64: 32, 32>}, {pipeline_mode = #tpu.pipeline_mode<synchronous>, transform_indices = @transform_4, window_bounds = array<i64: 1, 32>}, {pipeline_mode = #tpu.pipeline_mode<synchronous>, transform_indices = @transform_5, window_bounds = array<i64: 32, 32>}, {pipeline_mode = #tpu.pipeline_mode<synchronous>, transform_indices = @transform_6, window_bounds = array<i64: 1, 32>}, {transform_indices = @transform_7, window_bounds = array<i64: 8, 32>}]} {
    %c0 = arith.constant 0 : index
    %c0_0 = arith.constant 0 : index
    %0 = vector.load %arg1[%c0, %c0_0] : memref<8x32xf32, #tpu.memory_space<vmem>>, vector<8x32xf32>
    %1 = arith.truncf %0 : vector<8x32xf32> to vector<8x32xbf16>
    %c0_1 = arith.constant 0 : index
    %c0_2 = arith.constant 0 : index
    %2 = vector.load %arg2[%c0_1, %c0_2] : memref<32x32xbf16, #tpu.memory_space<vmem>>, vector<32x32xbf16>
    %cst = arith.constant dense<0.000000e+00> : vector<8x32xf32>
    %3 = tpu.matmul %1, %2, %cst {dimension_numbers = #tpu.dot_dimension_numbers<[1], [0], [0], [1], [0, 0, 1, 1], [], []>} : vector<8x32xbf16>, vector<32x32xbf16>, vector<8x32xf32> -> vector<8x32xf32>
    %c0_3 = arith.constant 0 : index
    %c0_4 = arith.constant 0 : index
    %4 = vector.load %arg3[%c0_3, %c0_4] : memref<1x32xf32, #tpu.memory_space<vmem>>, vector<1x32xf32>
    %5 = vector.broadcast %4 : vector<1x32xf32> to vector<8x32xf32>
    %6 = arith.addf %3, %5 : vector<8x32xf32>
    %7 = arith.truncf %6 : vector<8x32xf32> to vector<8x32xbf16>
    %8 = math.tanh %7 : vector<8x32xbf16>
    %c0_5 = arith.constant 0 : index
    %c0_6 = arith.constant 0 : index
    %9 = vector.load %arg4[%c0_5, %c0_6] : memref<32x32xbf16, #tpu.memory_space<vmem>>, vector<32x32xbf16>
    %cst_7 = arith.constant dense<0.000000e+00> : vector<8x32xf32>
    %10 = tpu.matmul %8, %9, %cst_7 {dimension_numbers = #tpu.dot_dimension_numbers<[1], [0], [0], [1], [0, 0, 1, 1], [], []>} : vector<8x32xbf16>, vector<32x32xbf16>, vector<8x32xf32> -> vector<8x32xf32>
    %c0_8 = arith.constant 0 : index
    %c0_9 = arith.constant 0 : index
    %11 = vector.load %arg5[%c0_8, %c0_9] : memref<1x32xf32, #tpu.memory_space<vmem>>, vector<1x32xf32>
    %12 = vector.broadcast %11 : vector<1x32xf32> to vector<8x32xf32>
    %13 = arith.addf %10, %12 : vector<8x32xf32>
    %14 = arith.truncf %13 : vector<8x32xf32> to vector<8x32xbf16>
    %15 = math.tanh %14 : vector<8x32xbf16>
    %c0_10 = arith.constant 0 : index
    %c0_11 = arith.constant 0 : index
    %16 = vector.load %arg6[%c0_10, %c0_11] : memref<32x32xbf16, #tpu.memory_space<vmem>>, vector<32x32xbf16>
    %cst_12 = arith.constant dense<0.000000e+00> : vector<8x32xf32>
    %17 = tpu.matmul %15, %16, %cst_12 {dimension_numbers = #tpu.dot_dimension_numbers<[1], [0], [0], [1], [0, 0, 1, 1], [], []>} : vector<8x32xbf16>, vector<32x32xbf16>, vector<8x32xf32> -> vector<8x32xf32>
    %c0_13 = arith.constant 0 : index
    %c0_14 = arith.constant 0 : index
    %18 = vector.load %arg7[%c0_13, %c0_14] : memref<1x32xf32, #tpu.memory_space<vmem>>, vector<1x32xf32>
    %19 = vector.broadcast %18 : vector<1x32xf32> to vector<8x32xf32>
    %20 = arith.addf %17, %19 : vector<8x32xf32>
    %c0_15 = arith.constant 0 : index
    %c0_16 = arith.constant 0 : index
    %21 = vector.load %arg8[%c0_15, %c0_16] : memref<8x32xf32, #tpu.memory_space<vmem>>, vector<8x32xf32>
    tpu.vector_store %arg8[%c0_15, %c0_16], %20 {strides = array<i32>} : memref<8x32xf32, #tpu.memory_space<vmem>>, vector<8x32xf32>,
    return
  }
  func.func @transform_0(%arg0: i32) -> (i32, i32) {
    %c0_i32 = arith.constant 0 : i32
    %c0_i32_0 = arith.constant 0 : i32
    return %arg0, %c0_i32 : i32, i32
  }
  func.func @transform_1(%arg0: i32) -> (i32, i32) {
    %c0_i32 = arith.constant 0 : i32
    %c0_i32_0 = arith.constant 0 : i32
    %c0_i32_1 = arith.constant 0 : i32
    return %c0_i32, %c0_i32_0 : i32, i32
  }
  func.func @transform_2(%arg0: i32) -> (i32, i32) {
    %c0_i32 = arith.constant 0 : i32
    %c0_i32_0 = arith.constant 0 : i32
    %c0_i32_1 = arith.constant 0 : i32
    return %c0_i32, %c0_i32_0 : i32, i32
  }
  func.func @transform_3(%arg0: i32) -> (i32, i32) {
    %c0_i32 = arith.constant 0 : i32
    %c0_i32_0 = arith.constant 0 : i32
    %c0_i32_1 = arith.constant 0 : i32
    return %c0_i32, %c0_i32_0 : i32, i32
  }
  func.func @transform_4(%arg0: i32) -> (i32, i32) {
    %c0_i32 = arith.constant 0 : i32
    %c0_i32_0 = arith.constant 0 : i32
    %c0_i32_1 = arith.constant 0 : i32
    return %c0_i32, %c0_i32_0 : i32, i32
  }
  func.func @transform_5(%arg0: i32) -> (i32, i32) {
    %c0_i32 = arith.constant 0 : i32
    %c0_i32_0 = arith.constant 0 : i32
    %c0_i32_1 = arith.constant 0 : i32
    return %c0_i32, %c0_i32_0 : i32, i32
  }
  func.func @transform_6(%arg0: i32) -> (i32, i32) {
    %c0_i32 = arith.constant 0 : i32
    %c0_i32_0 = arith.constant 0 : i32
    %c0_i32_1 = arith.constant 0 : i32
    return %c0_i32, %c0_i32_0 : i32, i32
  }
  func.func @transform_7(%arg0: i32) -> (i32, i32) {
    %c0_i32 = arith.constant 0 : i32
    %c0_i32_0 = arith.constant 0 : i32
    return %arg0, %c0_i32 : i32, i32
  }
}

</mosaic_0001>

<llo_original>
// kernel: tpu_custom_call.1
$region0: #{tpu_custom_call.1}
  #allocation0 [shape = 'u32[]', space=smem, size = 0x4, offset = 0x4, fixed_abs, tag = 'smem constant byte address 0x4 - core index']
  #allocation1 [shape = 'u32[144,128]{1,0:T(1,128)}', space=vmem, size = 0x12000, scoped, tag = 'internal scratch']
  %s0 = inlined_call_operand.hbm [shape: f32[8,32], index: 0, kind: input, shape index: {}]
  %s1 = inlined_call_operand.hbm [shape: bf16[32,32], index: 1, kind: input, shape index: {}]
  %s2 = inlined_call_operand.vmem [shape: f32[1,32], index: 2, kind: input, shape index: {}]
  %s3 = inlined_call_operand.hbm [shape: bf16[32,32], index: 3, kind: input, shape index: {}]
  %s4 = inlined_call_operand.vmem [shape: f32[1,32], index: 4, kind: input, shape index: {}]
  %s5 = inlined_call_operand.vmem [shape: bf16[32,32], index: 5, kind: input, shape index: {}]
  %s6 = inlined_call_operand.vmem [shape: f32[1,32], index: 6, kind: input, shape index: {}]
  %s7 = inlined_call_operand.hbm [shape: f32[8,32], index: 7, kind: output, shape index: {}]
  %s8 = sld [smem:[#allocation0]]
  $region50: #{tpu_custom_call.1} parent=0
    _
  %s10 = ssub.s32 1, %s8
  %s11 = scalar_select 0, %s10, %s8
  $region1: #{tpu_custom_call.1} parent=0
    #allocation2 [shape = 'u8[4096]{0}', space=vmem, size = 0x1000, scoped, tag = 'input window, operand 0, single buffered']
    #allocation3 [shape = 's32[1]{0}', space=sflag, size = 0x4, scoped, tag = 'scoped memory for tpu_custom_call.1']
    #allocation4 [shape = 's32[1]{0}', space=sflag, size = 0x4, scoped, tag = 'scoped memory for tpu_custom_call.1']
    #allocation5 [shape = 'u8[8192]{0}', space=vmem, size = 0x2000, scoped, tag = 'input window, operand 1, single buffered']
    #allocation6 [shape = 's32[1]{0}', space=sflag, size = 0x4, scoped, tag = 'scoped memory for tpu_custom_call.1']
    #allocation7 [shape = 'u8[8192]{0}', space=vmem, size = 0x2000, scoped, tag = 'input window, operand 3, single buffered']
    #allocation8 [shape = 'u8[4096]{0}', space=vmem, size = 0x1000, scoped, tag = 'output window, operand 0, single buffered']
    %12 = vsyncpa [#allocation3], 0
    %13 = vsyncpa [#allocation6], 0
    %14 = vsyncpa [#allocation4], 0
    // Predicated region
    $region2: #{tpu_custom_call.1} parent=1 // pred_check
      _
    $region3: #{tpu_custom_call.1} parent=1 // pred_check_branch
      %16 = sbr.rel (0) target = $region5
    $region4: #{tpu_custom_call.1} parent=1 // pred_region
      %s18 = ssub.s32 128, 128
      %19 = vsyncadd [#allocation3], %s18
      %s21 = sshll.u32 [#allocation2], 4
      %s22 = int_to_ptr.vmem [resolvable:$true] %s21
      %24 = dma.hbm_to_vmem [thread:$0]  %s0, 128, %s22, [#allocation3]
    $region5: #{tpu_custom_call.1} parent=1 // pred_fallthru
      _
    // Predicated region
    $region6: #{tpu_custom_call.1} parent=1 // pred_check
      _
    $region7: #{tpu_custom_call.1} parent=1 // pred_check_branch
      %26 = sbr.rel (0) target = $region9
    $region8: #{tpu_custom_call.1} parent=1 // pred_region
      %s28 = ssub.s32 256, 256
      %29 = vsyncadd [#allocation6], %s28
      %s30 = sshll.u32 [#allocation5], 4
      %s31 = int_to_ptr.vmem [resolvable:$true] %s30
      %36 = dma.hbm_to_vmem [thread:$0]  %s1, 256, %s31, [#allocation6], 64, 64, 4
    $region9: #{tpu_custom_call.1} parent=1 // pred_fallthru
      _
    // Predicated region
    $region10: #{tpu_custom_call.1} parent=1 // pred_check
      _
    $region11: #{tpu_custom_call.1} parent=1 // pred_check_branch
      %38 = sbr.rel (0) target = $region13
    $region12: #{tpu_custom_call.1} parent=1 // pred_region
      _
    $region13: #{tpu_custom_call.1} parent=1 // pred_fallthru
      _
    // Predicated region
    $region14: #{tpu_custom_call.1} parent=1 // pred_check
      _
    $region15: #{tpu_custom_call.1} parent=1 // pred_check_branch
      %40 = sbr.rel (0) target = $region17
    $region16: #{tpu_custom_call.1} parent=1 // pred_region
      %s42 = ssub.s32 256, 256
      %43 = vsyncadd [#allocation6], %s42
      %s44 = sshll.u32 [#allocation7], 4
      %s45 = int_to_ptr.vmem [resolvable:$true] %s44
      %50 = dma.hbm_to_vmem [thread:$0]  %s3, 256, %s45, [#allocation6], 64, 64, 4
    $region17: #{tpu_custom_call.1} parent=1 // pred_fallthru
      _
    // Predicated region
    $region18: #{tpu_custom_call.1} parent=1 // pred_check
      _
    $region19: #{tpu_custom_call.1} parent=1 // pred_check_branch
      %52 = sbr.rel (0) target = $region21
    $region20: #{tpu_custom_call.1} parent=1 // pred_region
      _
    $region21: #{tpu_custom_call.1} parent=1 // pred_fallthru
      _
    // Predicated region
    $region22: #{tpu_custom_call.1} parent=1 // pred_check
      _
    $region23: #{tpu_custom_call.1} parent=1 // pred_check_branch
      %54 = sbr.rel (0) target = $region25
    $region24: #{tpu_custom_call.1} parent=1 // pred_region
      _
    $region25: #{tpu_custom_call.1} parent=1 // pred_fallthru
      _
    // Predicated region
    $region26: #{tpu_custom_call.1} parent=1 // pred_check
      _
    $region27: #{tpu_custom_call.1} parent=1 // pred_check_branch
      %56 = sbr.rel (0) target = $region29
    $region28: #{tpu_custom_call.1} parent=1 // pred_region
      _
    $region29: #{tpu_custom_call.1} parent=1 // pred_fallthru
      _
    // Predicated region
    $region30: #{tpu_custom_call.1} parent=1 // pred_check
      _
    $region31: #{tpu_custom_call.1} parent=1 // pred_check_branch
      %58 = sbr.rel (0) target = $region33
    $region32: #{tpu_custom_call.1} parent=1 // pred_region
      %59 = dma.done [#allocation3], 128
    $region33: #{tpu_custom_call.1} parent=1 // pred_fallthru
      _
    // Predicated region
    $region34: #{tpu_custom_call.1} parent=1 // pred_check
      _
    $region35: #{tpu_custom_call.1} parent=1 // pred_check_branch
      %61 = sbr.rel (0) target = $region37
    $region36: #{tpu_custom_call.1} parent=1 // pred_region
      %62 = dma.done [#allocation6], 256
    $region37: #{tpu_custom_call.1} parent=1 // pred_fallthru
      _
    // Predicated region
    $region38: #{tpu_custom_call.1} parent=1 // pred_check
      _
    $region39: #{tpu_custom_call.1} parent=1 // pred_check_branch
      %64 = sbr.rel (0) target = $region41
    $region40: #{tpu_custom_call.1} parent=1 // pred_region
      %65 = dma.done [#allocation6], 256
    $region41: #{tpu_custom_call.1} parent=1 // pred_fallthru
      _
    %v67 = vld [vmem:[#allocation2] sm:$0xff]
    %v68 = vpack.c.bf16 %v67, %v67
    %v69 = vld [vmem:[#allocation5] sm:$0xf]
    %v70 = vld [vmem:[#allocation5 + $0x4] sm:$0xf]
    %v71 = vld [vmem:[#allocation5 + $0x8] sm:$0xf]
    %v72 = vld [vmem:[#allocation5 + $0xc] sm:$0xf]
    %v73 = vld [vmem:[%s2] sm:$0x1]
    %v75 = vlaneseq
    %v76 = vshrl.u32 %v75, 7
    %v77 = vsub.s32 0, %v76
    %v78 = vrot.slane %v73, %v77
    %v84 = vunpack.c.l.b16 %v69
    %v85 = vunpack.c.l.b16 %v70
    %v86 = vunpack.c.l.b16 %v71
    %v87 = vunpack.c.l.b16 %v72
    %v88 = vpack.c.b16 %v85, %v84
    %v89 = vpack.c.b16 %v87, %v86
    %vm92 = vcmask 261120
    %v94 = vsel %vm92, %v68, 0
    %96 = vmatprep.subr.bf16.mxu0 0
    %97 = vmatpush1.bf16.msra.mxu0 %v88
    %98 = vmatprep.subr.bf16.mxu0 0
    %99 = vmatpush1.bf16.msra.mxu0 %v89
    %100 = vmatprep.subr.bf16.mxu0 0
    %101 = vmatpush1.bf16.msra.mxu0 0
    %102 = vmatprep.subr.bf16.mxu0 0
    %103 = vmatpush1.bf16.msra.mxu0 0
    %104 = vmatprep.subr.bf16.mxu0 0
    %105 = vmatpush1.bf16.msra.mxu0 0
    %106 = vmatprep.subr.bf16.mxu0 0
    %107 = vmatpush1.bf16.msra.mxu0 0
    %108 = vmatprep.subr.bf16.mxu0 0
    %109 = vmatpush1.bf16.msra.mxu0 0
    %110 = vmatprep.subr.bf16.mxu0 0
    %111 = vmatpush1.bf16.msra.mxu0 0
    %112 = vmatprep.subr.bf16.mxu0 0
    %113 = vmatpush1.bf16.msra.mxu0 0
    %114 = vmatprep.subr.bf16.mxu0 0
    %115 = vmatpush1.bf16.msra.mxu0 0
    %116 = vmatprep.subr.bf16.mxu0 0
    %117 = vmatpush1.bf16.msra.mxu0 0
    %118 = vmatprep.subr.bf16.mxu0 0
    %119 = vmatpush1.bf16.msra.mxu0 0
    %120 = vmatprep.subr.bf16.mxu0 0
    %121 = vmatpush1.bf16.msra.mxu0 0
    %122 = vmatprep.subr.bf16.mxu0 0
    %123 = vmatpush1.bf16.msra.mxu0 0
    %124 = vmatprep.subr.bf16.mxu0 0
    %125 = vmatpush1.bf16.msra.mxu0 0
    %126 = vmatprep.subr.bf16.mxu0 0
    %127 = vmatpush1.bf16.msra.mxu0 0
    %128 = vmatprep.mubr.bf16.mxu0 0
    %129 = vmatmul.mubr.bf16.gmra.mrb[0].mxu0 %v94
    %v130 = vpop.f32.mrb[0].mxu0
    %v131 = vadd.f32 %v78, %v130
    %v132 = vpop.f32.mrb[0].mxu0
    %v133 = vpop.f32.mrb[0].mxu0
    %v134 = vpop.f32.mrb[0].mxu0
    %135 = vdwg.mxu0
    %v136 = vpack.c.bf16 %v131, %v131
    %v137 = vtanh.bf16.pop %v136
    %v138 = vld [vmem:[#allocation7] sm:$0xf]
    %v139 = vld [vmem:[#allocation7 + $0x4] sm:$0xf]
    %v140 = vld [vmem:[#allocation7 + $0x8] sm:$0xf]
    %v141 = vld [vmem:[#allocation7 + $0xc] sm:$0xf]
    %v142 = vld [vmem:[%s4] sm:$0x1]
    %v144 = vlaneseq
    %v145 = vshrl.u32 %v144, 7
    %v146 = vsub.s32 0, %v145
    %v147 = vrot.slane %v142, %v146
    %v153 = vunpack.c.l.b16 %v138
    %v154 = vunpack.c.l.b16 %v139
    %v155 = vunpack.c.l.b16 %v140
    %v156 = vunpack.c.l.b16 %v141
    %v157 = vpack.c.b16 %v154, %v153
    %v158 = vpack.c.b16 %v156, %v155
    %v162 = vsel %vm92, %v137, 0
    %164 = vmatprep.subr.bf16.mxu0 0
    %165 = vmatpush1.bf16.msra.mxu0 %v157
    %166 = vmatprep.subr.bf16.mxu0 0
    %167 = vmatpush1.bf16.msra.mxu0 %v158
    %168 = vmatprep.subr.bf16.mxu0 0
    %169 = vmatpush1.bf16.msra.mxu0 0
    %170 = vmatprep.subr.bf16.mxu0 0
    %171 = vmatpush1.bf16.msra.mxu0 0
    %172 = vmatprep.subr.bf16.mxu0 0
    %173 = vmatpush1.bf16.msra.mxu0 0
    %174 = vmatprep.subr.bf16.mxu0 0
    %175 = vmatpush1.bf16.msra.mxu0 0
    %176 = vmatprep.subr.bf16.mxu0 0
    %177 = vmatpush1.bf16.msra.mxu0 0
    %178 = vmatprep.subr.bf16.mxu0 0
    %179 = vmatpush1.bf16.msra.mxu0 0
    %180 = vmatprep.subr.bf16.mxu0 0
    %181 = vmatpush1.bf16.msra.mxu0 0
    %182 = vmatprep.subr.bf16.mxu0 0
    %183 = vmatpush1.bf16.msra.mxu0 0
    %184 = vmatprep.subr.bf16.mxu0 0
    %185 = vmatpush1.bf16.msra.mxu0 0
    %186 = vmatprep.subr.bf16.mxu0 0
    %187 = vmatpush1.bf16.msra.mxu0 0
    %188 = vmatprep.subr.bf16.mxu0 0
    %189 = vmatpush1.bf16.msra.mxu0 0
    %190 = vmatprep.subr.bf16.mxu0 0
    %191 = vmatpush1.bf16.msra.mxu0 0
    %192 = vmatprep.subr.bf16.mxu0 0
    %193 = vmatpush1.bf16.msra.mxu0 0
    %194 = vmatprep.subr.bf16.mxu0 0
    %195 = vmatpush1.bf16.msra.mxu0 0
    %196 = vmatprep.mubr.bf16.mxu0 0
    %197 = vmatmul.mubr.bf16.gmra.mrb[0].mxu0 %v162
    %v198 = vpop.f32.mrb[0].mxu0
    %v199 = vadd.f32 %v147, %v198
    %v200 = vpop.f32.mrb[0].mxu0
    %v201 = vpop.f32.mrb[0].mxu0
    %v202 = vpop.f32.mrb[0].mxu0
    %203 = vdwg.mxu0
    %v204 = vpack.c.bf16 %v199, %v199
    %v205 = vtanh.bf16.pop %v204
    %v206 = vld [vmem:[%s5] sm:$0xf]
    %v207 = vld [vmem:[%s5 + $0x4] sm:$0xf]
    %v208 = vld [vmem:[%s5 + $0x8] sm:$0xf]
    %v209 = vld [vmem:[%s5 + $0xc] sm:$0xf]
    %v210 = vld [vmem:[%s6] sm:$0x1]
    %v212 = vlaneseq
    %v213 = vshrl.u32 %v212, 7
    %v214 = vsub.s32 0, %v213
    %v215 = vrot.slane %v210, %v214
    %v221 = vunpack.c.l.b16 %v206
    %v222 = vunpack.c.l.b16 %v207
    %v223 = vunpack.c.l.b16 %v208
    %v224 = vunpack.c.l.b16 %v209
    %v225 = vpack.c.b16 %v222, %v221
    %v226 = vpack.c.b16 %v224, %v223
    %v230 = vsel %vm92, %v205, 0
    %232 = vmatprep.subr.bf16.mxu0 0
    %233 = vmatpush1.bf16.msra.mxu0 %v225
    %234 = vmatprep.subr.bf16.mxu0 0
    %235 = vmatpush1.bf16.msra.mxu0 %v226
    %236 = vmatprep.subr.bf16.mxu0 0
    %237 = vmatpush1.bf16.msra.mxu0 0
    %238 = vmatprep.subr.bf16.mxu0 0
    %239 = vmatpush1.bf16.msra.mxu0 0
    %240 = vmatprep.subr.bf16.mxu0 0
    %241 = vmatpush1.bf16.msra.mxu0 0
    %242 = vmatprep.subr.bf16.mxu0 0
    %243 = vmatpush1.bf16.msra.mxu0 0
    %244 = vmatprep.subr.bf16.mxu0 0
    %245 = vmatpush1.bf16.msra.mxu0 0
    %246 = vmatprep.subr.bf16.mxu0 0
    %247 = vmatpush1.bf16.msra.mxu0 0
    %248 = vmatprep.subr.bf16.mxu0 0
    %249 = vmatpush1.bf16.msra.mxu0 0
    %250 = vmatprep.subr.bf16.mxu0 0
    %251 = vmatpush1.bf16.msra.mxu0 0
    %252 = vmatprep.subr.bf16.mxu0 0
    %253 = vmatpush1.bf16.msra.mxu0 0
    %254 = vmatprep.subr.bf16.mxu0 0
    %255 = vmatpush1.bf16.msra.mxu0 0
    %256 = vmatprep.subr.bf16.mxu0 0
    %257 = vmatpush1.bf16.msra.mxu0 0
    %258 = vmatprep.subr.bf16.mxu0 0
    %259 = vmatpush1.bf16.msra.mxu0 0
    %260 = vmatprep.subr.bf16.mxu0 0
    %261 = vmatpush1.bf16.msra.mxu0 0
    %262 = vmatprep.subr.bf16.mxu0 0
    %263 = vmatpush1.bf16.msra.mxu0 0
    %264 = vmatprep.mubr.bf16.mxu0 0
    %265 = vmatmul.mubr.bf16.gmra.mrb[0].mxu0 %v230
    %v266 = vpop.f32.mrb[0].mxu0
    %v267 = vadd.f32 %v215, %v266
    %v268 = vpop.f32.mrb[0].mxu0
    %v269 = vpop.f32.mrb[0].mxu0
    %v270 = vpop.f32.mrb[0].mxu0
    %271 = vdwg.mxu0
    %272 = vst.msk [vmem:[#allocation8] sm:$0xff] %vm92, %v267
    // Predicated region
    $region42: #{tpu_custom_call.1} parent=1 // pred_check
      _
    $region43: #{tpu_custom_call.1} parent=1 // pred_check_branch
      %274 = sbr.rel (0) target = $region45
    $region44: #{tpu_custom_call.1} parent=1 // pred_region
      %s276 = ssub.s32 128, 128
      %277 = vsyncadd [#allocation4], %s276
      %s279 = sshll.u32 [#allocation8], 4
      %s280 = int_to_ptr.vmem [resolvable:$true] %s279
      %282 = dma.vmem_to_hbm [thread:$0]  %s280, 128, %s7, [#allocation4]
    $region45: #{tpu_custom_call.1} parent=1 // pred_fallthru
      _
    // Predicated region
    $region46: #{tpu_custom_call.1} parent=1 // pred_check
      _
    $region47: #{tpu_custom_call.1} parent=1 // pred_check_branch
      %284 = sbr.rel (0) target = $region49
    $region48: #{tpu_custom_call.1} parent=1 // pred_region
      %285 = dma.done [#allocation4], 128
    $region49: #{tpu_custom_call.1} parent=1 // pred_fallthru
      _
    %286 = vsyncpa [#allocation3], 1
    %287 = vsyncpa [#allocation6], 1
    %288 = vsyncpa [#allocation4], 1

</llo_original>
